<compile_context>
chip_gen: v5e
topology: v5e:2x2
jax: 0.10.0
libtpu: 0.0.40
codegen_flags: <defaults>
</compile_context>

<pallas_src>
import functools

import jax
import jax.numpy as jnp
from jax.experimental import pallas as pl
from jax.experimental.pallas import tpu as pltpu


def _round_up(x, m):
    return ((x + m - 1) // m) * m


def _cdiv(a, b):
    return -(-a // b)


# ---------------------------------------------------------------------------
# One-time capability probes (import time, not in the per-call hot path).
# ---------------------------------------------------------------------------
def _probe_vmem_capacity_bytes():
    # Narrow capability probe with a conservative default (v7x per-TC VMEM).
    try:
        return int(pltpu.get_tpu_info().vmem_capacity_bytes)
    except Exception:
        return 64 << 20


def _probe_lane_align():
    # v6e/v7x MXU is 2x256x256 -> 256-lane alignment fills it; v2-v5 MXU is 128x128.
    try:
        kind = jax.devices()[0].device_kind.lower()
    except Exception:
        return 256
    return 128 if any(t in kind for t in ("v2", "v3", "v4", "v5")) else 256


_VMEM_CAP = _probe_vmem_capacity_bytes()
_LANE_ALIGN = _probe_lane_align()
# Single-buffer grid-invariant (resident) operands when the API supports it.
_HAS_BUFFERED = hasattr(pl, "Buffered")
_SINGLE_BUFFER_KW = {"pipeline_mode": pl.Buffered(1)} if _HAS_BUFFERED else {}
_RESIDENT_W_BUFFERS = 1 if _HAS_BUFFERED else 2


def _vmem_limit(needed_bytes):
    # Leave ~18% of VMEM for compiler temps / pipeline buffers (matters most on
    # v7x where 64 MiB is the whole per-TC VMEM); never below 32 MiB.
    cap = int(_VMEM_CAP * 0.82)
    return int(min(max(needed_bytes + (16 << 20), 32 << 20), cap))


# ---------------------------------------------------------------------------
# Kernels
# ---------------------------------------------------------------------------
def _resident_kernel(x_ref, w_ref, b_ref, o_ref, *, depth):
    # x_ref : (tm, width_p) activation tile
    # w_ref : (depth, width_p, width_p), (in, out) layout, alpha pre-folded
    # b_ref : (depth, 1, width_p) f32, alpha pre-folded
    # o_ref : (tm, width_p)
    y0 = x_ref[...].astype(jnp.float32)

    def layer(d, y):
        w = w_ref[d]                                  # (width_p, width_p)
        b = b_ref[d]                                  # (1, width_p), f32
        dense = jnp.dot(y.astype(w.dtype), w,
                        preferred_element_type=jnp.float32) + b
        return jnp.maximum(y + dense, 0.0)

    y = jax.lax.fori_loop(0, depth, layer, y0, unroll=True)
    o_ref[...] = y.astype(o_ref.dtype)


def _streamed_kernel(x_ref, w_ref, b_ref, o_ref, acc_ref):
    # grid = (batch tiles, depth); one layer per step along axis 1.
    # x_ref/o_ref : (tm, width_p), resident across the depth axis
    # w_ref       : (1, width_p, width_p) current layer's weights (streamed)
    # b_ref       : (1, 1, width_p) current layer's bias (f32)
    # acc_ref     : (tm, width_p) f32 activation accumulator (scratch)
    d = pl.program_id(1)

    @pl.when(d == 0)
    def _():
        acc_ref[...] = x_ref[...].astype(jnp.float32)

    y = acc_ref[...]
    w = w_ref[0]
    b = b_ref[0]
    dense = jnp.dot(y.astype(w.dtype), w, preferred_element_type=jnp.float32) + b
    y = jnp.maximum(y + dense, 0.0)
    acc_ref[...] = y

    @pl.when(d == pl.num_programs(1) - 1)
    def _():
        o_ref[...] = y.astype(o_ref.dtype)


# ---------------------------------------------------------------------------
# Wrapper
# ---------------------------------------------------------------------------
def prepare_res_dense_params(weights, biases, alphas, *, weight_dtype=jnp.bfloat16):
    """One-time parameter re-layout; hoist this out of the per-call hot path.

    weights: (depth, width, width) in nn.Linear (out, in) layout
    biases : (depth, width);  alphas: (depth,) or broadcastable
    weight_dtype: MXU streaming dtype (bf16 default; f32 exact; fp8 on v7x).
    """
    depth, width, _ = weights.shape
    alphas = alphas.reshape(depth).astype(jnp.float32)

    # Fold the Linear transpose and alpha into the stored weights / biases:
    #   relu(x + alpha*(x W^T + b)) == relu(x + x (alpha W^T) + alpha b)
    w_t = jnp.transpose(weights, (0, 2, 1)).astype(jnp.float32) * alphas[:, None, None]
    b = biases.reshape(depth, width).astype(jnp.float32) * alphas[:, None]

    # Lane-dense padding; zero padding is exact through dense + residual + ReLU.
    align = _LANE_ALIGN if width > 128 else 128
    width_p = _round_up(max(width, 128), align)
    pad = width_p - width
    if pad:
        w_t = jnp.pad(w_t, ((0, 0), (0, pad), (0, pad)))
        b = jnp.pad(b, ((0, 0), (0, pad)))

    return {
        "w": w_t.astype(weight_dtype),          # (depth, width_p, width_p), (in, out)
        "b": b.reshape(depth, 1, width_p),      # (depth, 1, width_p), f32
        "width": width,
        "width_p": width_p,
        "depth": depth,
    }


def _pick_tm(batch, tm_max):
    n_tiles = max(1, _cdiv(batch, tm_max))
    if n_tiles == 1 and batch >= 16:
        n_tiles = 2  # >= 2 grid steps so v7x megacore can shard the batch axis
    return max(8, _round_up(_cdiv(batch, n_tiles), 8))


def res_dense_block_apply(x, params, *, tm=None, stream_weights=None):
    """Apply the block to x: (B, width) -> (B, width) in x.dtype."""
    B, width = x.shape
    w, b = params["w"], params["b"]
    depth, width_p = params["depth"], params["width_p"]
    assert width == params["width"], "x width does not match prepared params"

    w_itemsize = jnp.dtype(w.dtype).itemsize
    w_bytes = depth * width_p * width_p * w_itemsize
    if stream_weights is None:
        # Stream per layer when keeping the whole stack resident would eat >~40% of VMEM.
        stream_weights = (_RESIDENT_W_BUFFERS * w_bytes) > int(0.4 * _VMEM_CAP)

    # Balanced batch tiles (minimal zero-row padding).  When streaming weights,
    # use a larger tile so arithmetic intensity per streamed weight byte stays
    # above the HBM roofline.
    tm_max = int(tm) if tm is not None else (512 if stream_weights else 256)
    tm_eff = _pick_tm(B, tm_max)
    B_p = _round_up(B, tm_eff)

    if B_p != B or width_p != width:
        x_in = jnp.pad(x, ((0, B_p - B), (0, width_p - width)))
    else:
        x_in = x

    grid_m = B_p // tm_eff
    out_shape = jax.ShapeDtypeStruct((B_p, width_p), x.dtype)
    act_bytes = 8 * tm_eff * width_p * 4   # in/out tiles (double-buffered) + f32 temps

    if stream_weights:
        needed = (3 * width_p * width_p * w_itemsize   # buffered weight slabs
                  + depth * width_p * 4                # bias slabs (overestimate)
                  + tm_eff * width_p * 4               # f32 accumulator scratch
                  + act_bytes)
        call = pl.pallas_call(
            _streamed_kernel,
            out_shape=out_shape,
            grid_spec=pltpu.PrefetchScalarGridSpec(
                num_scalar_prefetch=0,
                grid=(grid_m, depth),
                in_specs=[
                    pl.BlockSpec((tm_eff, width_p), lambda i, d: (i, 0)),        # x (resident over d)
                    pl.BlockSpec((1, width_p, width_p), lambda i, d: (d, 0, 0)),  # W[d] streamed
                    pl.BlockSpec((1, 1, width_p), lambda i, d: (d, 0, 0)),        # b[d] streamed
                ],
                out_specs=pl.BlockSpec((tm_eff, width_p), lambda i, d: (i, 0)),
                scratch_shapes=[pltpu.VMEM((tm_eff, width_p), jnp.float32)],
            ),
            compiler_params=pltpu.CompilerParams(
                dimension_semantics=("parallel", "arbitrary"),
                vmem_limit_bytes=_vmem_limit(needed),
            ),
        )
    else:
        needed = (_RESIDENT_W_BUFFERS * w_bytes        # resident weight stack
                  + 2 * depth * width_p * 4            # resident biases
                  + act_bytes)
        call = pl.pallas_call(
            functools.partial(_resident_kernel, depth=depth),
            out_shape=out_shape,
            grid_spec=pltpu.PrefetchScalarGridSpec(
                num_scalar_prefetch=0,
                grid=(grid_m,),
                in_specs=[
                    pl.BlockSpec((tm_eff, width_p), lambda i: (i, 0)),            # x tile
                    pl.BlockSpec((depth, width_p, width_p), lambda i: (0, 0, 0),
                                 **_SINGLE_BUFFER_KW),                            # all W resident
                    pl.BlockSpec((depth, 1, width_p), lambda i: (0, 0, 0),
                                 **_SINGLE_BUFFER_KW),                            # all b resident
                ],
                out_specs=pl.BlockSpec((tm_eff, width_p), lambda i: (i, 0)),
            ),
            compiler_params=pltpu.CompilerParams(
                dimension_semantics=("parallel",),
                vmem_limit_bytes=_vmem_limit(needed),
            ),
        )

    out = call(x_in, w, b)
    return out[:B, :width]


def res_dense_block(x, weights, biases, alphas, *, tm=None,
                    weight_dtype=jnp.bfloat16, stream_weights=None):
    """Convenience one-shot wrapper.

    In a real model, call prepare_res_dense_params once at init and
    res_dense_block_apply per step (or jit this whole function) so the weight
    transpose / padding re-layout is hoisted off the hot path.
    """
    params = prepare_res_dense_params(weights, biases, alphas, weight_dtype=weight_dtype)
    return res_dense_block_apply(x, params, tm=tm, stream_weights=stream_weights)


def res_dense_block_ref(x, weights, biases, alphas):
    y = x.astype(jnp.float32)
    for d in range(weights.shape[0]):
        dense = y @ weights[d].T + biases[d]
        y = jnp.maximum(y + alphas[d] * dense, 0.0)
    return y.astype(x.dtype)


if __name__ == "__main__":
    key = jax.random.PRNGKey(0)
    batch, width, depth = 16, 32, 3

    kx, kw, kb, ka = jax.random.split(key, 4)
    x = jax.random.normal(kx, (batch, width), dtype=jnp.float32)
    # nn.Linear(width, width) per layer -> stacked (depth, width, width) / (depth, width)
    bound = 1.0 / (width ** 0.5)
    weights = jax.random.uniform(kw, (depth, width, width), jnp.float32, -bound, bound)
    biases = jax.random.uniform(kb, (depth, width), jnp.float32, -bound, bound)
    # nn.Parameter(torch.zeros(1)) per layer; use nonzero values to exercise the math.
    alphas = jax.random.normal(ka, (depth,), dtype=jnp.float32) * 0.5
    # TODO(synk): dropout(p) with p>0 (training mode) not implemented; p=0 / eval is identity.

    ref = res_dense_block_ref(x, weights, biases, alphas)

    # 1) Default path: bf16 MXU weights, f32 accumulation (looser tolerance).
    out_bf16 = jax.block_until_ready(res_dense_block(x, weights, biases, alphas))
    assert out_bf16.shape == x.shape and out_bf16.dtype == x.dtype
    assert jnp.allclose(out_bf16, ref, atol=5e-2, rtol=5e-2), "bf16 path mismatch"

    # 2) Exact f32 weights, resident-weights pipeline.
    out_f32 = jax.block_until_ready(
        res_dense_block(x, weights, biases, alphas,
                        weight_dtype=jnp.float32, stream_weights=False))
    assert jnp.allclose(out_f32, ref, atol=1e-5, rtol=1e-5), "resident path mismatch"

    # 3) Explicitly exercise the streamed-per-layer pipeline (f32 for exact check).
    out_stream = jax.block_until_ready(
        res_dense_block(x, weights, biases, alphas,
                        weight_dtype=jnp.float32, stream_weights=True))
    assert jnp.allclose(out_stream, ref, atol=1e-5, rtol=1e-5), "streamed path mismatch"

    print("KERNEL_OK")
</pallas_src>

<mosaic_0001>
module attributes {stable_mosaic.version = 11 : i64} {
  func.func @_resident_kernel(%arg0: i32, %arg1: memref<8x128xf32, #tpu.memory_space<vmem>>, %arg2: memref<3x128x128xbf16, #tpu.memory_space<vmem>>, %arg3: memref<3x1x128xf32, #tpu.memory_space<vmem>>, %arg4: memref<8x128xf32, #tpu.memory_space<vmem>>) attributes {dimension_semantics = [#tpu.dimension_semantics<parallel>], iteration_bounds = array<i64: 2>, scalar_prefetch = 0 : i64, scratch_operands = 0 : i64, tpu.core_type = #tpu.core_type<tc>, window_params = [{transform_indices = @transform_0, window_bounds = array<i64: 8, 128>}, {pipeline_mode = #tpu.pipeline_mode<synchronous>, transform_indices = @transform_1, window_bounds = array<i64: 3, 128, 128>}, {pipeline_mode = #tpu.pipeline_mode<synchronous>, transform_indices = @transform_2, window_bounds = array<i64: 3, 1, 128>}, {transform_indices = @transform_3, window_bounds = array<i64: 8, 128>}]} {
    %c0 = arith.constant 0 : index
    %c0_0 = arith.constant 0 : index
    %0 = vector.load %arg1[%c0, %c0_0] : memref<8x128xf32, #tpu.memory_space<vmem>>, vector<8x128xf32>
    %c0_i32 = arith.constant 0 : i32
    %1 = arith.index_cast %c0_i32 : i32 to index
    %c0_1 = arith.constant 0 : index
    %c0_2 = arith.constant 0 : index
    %2 = vector.load %arg2[%1, %c0_1, %c0_2] : memref<3x128x128xbf16, #tpu.memory_space<vmem>>, vector<1x128x128xbf16>
    %3 = vector.shape_cast %2 : vector<1x128x128xbf16> to vector<128x128xbf16>
    %4 = arith.index_cast %c0_i32 : i32 to index
    %c0_3 = arith.constant 0 : index
    %c0_4 = arith.constant 0 : index
    %5 = vector.load %arg3[%4, %c0_3, %c0_4] : memref<3x1x128xf32, #tpu.memory_space<vmem>>, vector<1x1x128xf32>
    %6 = vector.shape_cast %5 : vector<1x1x128xf32> to vector<1x128xf32>
    %7 = arith.truncf %0 : vector<8x128xf32> to vector<8x128xbf16>
    %cst = arith.constant dense<0.000000e+00> : vector<8x128xf32>
    %8 = tpu.matmul %7, %3, %cst {dimension_numbers = #tpu.dot_dimension_numbers<[1], [0], [0], [1], [0, 0, 1, 1], [], []>} : vector<8x128xbf16>, vector<128x128xbf16>, vector<8x128xf32> -> vector<8x128xf32>
    %9 = vector.broadcast %6 : vector<1x128xf32> to vector<8x128xf32>
    %10 = arith.addf %8, %9 : vector<8x128xf32>
    %11 = arith.addf %0, %10 : vector<8x128xf32>
    %cst_5 = arith.constant 0.000000e+00 : f32
    %12 = vector.broadcast %cst_5 : f32 to vector<8x128xf32>
    %13 = arith.maximumf %11, %12 : vector<8x128xf32>
    %c1_i32 = arith.constant 1 : i32
    %14 = arith.index_cast %c1_i32 : i32 to index
    %c0_6 = arith.constant 0 : index
    %c0_7 = arith.constant 0 : index
    %15 = vector.load %arg2[%14, %c0_6, %c0_7] : memref<3x128x128xbf16, #tpu.memory_space<vmem>>, vector<1x128x128xbf16>
    %16 = vector.shape_cast %15 : vector<1x128x128xbf16> to vector<128x128xbf16>
    %17 = arith.index_cast %c1_i32 : i32 to index
    %c0_8 = arith.constant 0 : index
    %c0_9 = arith.constant 0 : index
    %18 = vector.load %arg3[%17, %c0_8, %c0_9] : memref<3x1x128xf32, #tpu.memory_space<vmem>>, vector<1x1x128xf32>
    %19 = vector.shape_cast %18 : vector<1x1x128xf32> to vector<1x128xf32>
    %20 = arith.truncf %13 : vector<8x128xf32> to vector<8x128xbf16>
    %cst_10 = arith.constant dense<0.000000e+00> : vector<8x128xf32>
    %21 = tpu.matmul %20, %16, %cst_10 {dimension_numbers = #tpu.dot_dimension_numbers<[1], [0], [0], [1], [0, 0, 1, 1], [], []>} : vector<8x128xbf16>, vector<128x128xbf16>, vector<8x128xf32> -> vector<8x128xf32>
    %22 = vector.broadcast %19 : vector<1x128xf32> to vector<8x128xf32>
    %23 = arith.addf %21, %22 : vector<8x128xf32>
    %24 = arith.addf %13, %23 : vector<8x128xf32>
    %cst_11 = arith.constant 0.000000e+00 : f32
    %25 = vector.broadcast %cst_11 : f32 to vector<8x128xf32>
    %26 = arith.maximumf %24, %25 : vector<8x128xf32>
    %c2_i32 = arith.constant 2 : i32
    %27 = arith.index_cast %c2_i32 : i32 to index
    %c0_12 = arith.constant 0 : index
    %c0_13 = arith.constant 0 : index
    %28 = vector.load %arg2[%27, %c0_12, %c0_13] : memref<3x128x128xbf16, #tpu.memory_space<vmem>>, vector<1x128x128xbf16>
    %29 = vector.shape_cast %28 : vector<1x128x128xbf16> to vector<128x128xbf16>
    %30 = arith.index_cast %c2_i32 : i32 to index
    %c0_14 = arith.constant 0 : index
    %c0_15 = arith.constant 0 : index
    %31 = vector.load %arg3[%30, %c0_14, %c0_15] : memref<3x1x128xf32, #tpu.memory_space<vmem>>, vector<1x1x128xf32>
    %32 = vector.shape_cast %31 : vector<1x1x128xf32> to vector<1x128xf32>
    %33 = arith.truncf %26 : vector<8x128xf32> to vector<8x128xbf16>
    %cst_16 = arith.constant dense<0.000000e+00> : vector<8x128xf32>
    %34 = tpu.matmul %33, %29, %cst_16 {dimension_numbers = #tpu.dot_dimension_numbers<[1], [0], [0], [1], [0, 0, 1, 1], [], []>} : vector<8x128xbf16>, vector<128x128xbf16>, vector<8x128xf32> -> vector<8x128xf32>
    %35 = vector.broadcast %32 : vector<1x128xf32> to vector<8x128xf32>
    %36 = arith.addf %34, %35 : vector<8x128xf32>
    %37 = arith.addf %26, %36 : vector<8x128xf32>
    %cst_17 = arith.constant 0.000000e+00 : f32
    %38 = vector.broadcast %cst_17 : f32 to vector<8x128xf32>
    %39 = arith.maximumf %37, %38 : vector<8x128xf32>
    %c3_i32 = arith.constant 3 : i32
    %c0_18 = arith.constant 0 : index
    %c0_19 = arith.constant 0 : index
    %40 = vector.load %arg4[%c0_18, %c0_19] : memref<8x128xf32, #tpu.memory_space<vmem>>, vector<8x128xf32>
    tpu.vector_store %arg4[%c0_18, %c0_19], %39 {strides = array<i32>} : memref<8x128xf32, #tpu.memory_space<vmem>>, vector<8x128xf32>,
    return
  }
  func.func @transform_0(%arg0: i32) -> (i32, i32) {
    %c0_i32 = arith.constant 0 : i32
    %c0_i32_0 = arith.constant 0 : i32
    return %arg0, %c0_i32 : i32, i32
  }
  func.func @transform_1(%arg0: i32) -> (i32, i32, i32) {
    %c0_i32 = arith.constant 0 : i32
    %c0_i32_0 = arith.constant 0 : i32
    %c0_i32_1 = arith.constant 0 : i32
    %c0_i32_2 = arith.constant 0 : i32
    return %c0_i32, %c0_i32_0, %c0_i32_1 : i32, i32, i32
  }
  func.func @transform_2(%arg0: i32) -> (i32, i32, i32) {
    %c0_i32 = arith.constant 0 : i32
    %c0_i32_0 = arith.constant 0 : i32
    %c0_i32_1 = arith.constant 0 : i32
    %c0_i32_2 = arith.constant 0 : i32
    return %c0_i32, %c0_i32_0, %c0_i32_1 : i32, i32, i32
  }
  func.func @transform_3(%arg0: i32) -> (i32, i32) {
    %c0_i32 = arith.constant 0 : i32
    %c0_i32_0 = arith.constant 0 : i32
    return %arg0, %c0_i32 : i32, i32
  }
}

</mosaic_0001>

<llo_original>
// kernel: tpu_custom_call.1
$region0: #{tpu_custom_call.1}
  #allocation0 [shape = 'u32[]', space=smem, size = 0x4, offset = 0x4, fixed_abs, tag = 'smem constant byte address 0x4 - core index']
  #allocation1 [shape = 'u32[72,128]{1,0:T(1,128)}', space=vmem, size = 0x9000, scoped, tag = 'internal scratch']
  %s0 = inlined_call_operand.hbm [shape: f32[16,128], index: 0, kind: input, shape index: {}]
  %s1 = inlined_call_operand.hbm [shape: bf16[3,128,128], index: 1, kind: input, shape index: {}]
  %s2 = inlined_call_operand.hbm [shape: f32[3,1,128], index: 2, kind: input, shape index: {}]
  %s3 = inlined_call_operand.hbm [shape: f32[16,128], index: 3, kind: output, shape index: {}]
  %s4 = sld [smem:[#allocation0]]
  $region57: #{tpu_custom_call.1} parent=0
    _
  %s6 = ssub.s32 1, %s4
  %s7 = scalar_select 0, %s6, %s4
  $region1: #{tpu_custom_call.1} parent=0
    #allocation2 [shape = 'u8[8192]{0}', space=vmem, size = 0x2000, scoped, tag = 'input window, operand 0']
    #allocation3 [shape = 's32[2]{0}', space=sflag, size = 0x8, scoped, tag = 'scoped memory for tpu_custom_call.1']
    #allocation4 [shape = 's32[2]{0}', space=sflag, size = 0x8, scoped, tag = 'scoped memory for tpu_custom_call.1']
    #allocation5 [shape = 'u8[98304]{0}', space=vmem, size = 0x18000, scoped, tag = 'input window, operand 1, single buffered']
    #allocation6 [shape = 's32[1]{0}', space=sflag, size = 0x4, scoped, tag = 'scoped memory for tpu_custom_call.1']
    #allocation7 [shape = 'u8[1536]{0}', space=vmem, size = 0x800, scoped, tag = 'input window, operand 2, single buffered']
    #allocation8 [shape = 'u8[8192]{0}', space=vmem, size = 0x2000, scoped, tag = 'output window, operand 0']
    %8 = vsyncpa [#allocation3], 0
    %s9 = scalar_lea.sflag [#allocation3], 1
    %10 = vsyncpa %s9, 0
    %11 = vsyncpa [#allocation6], 0
    %12 = vsyncpa [#allocation4], 0
    %s13 = scalar_lea.sflag [#allocation4], 1
    %14 = vsyncpa %s13, 0
    loop: start=0, step=1, limit=4
    $region2: #{tpu_custom_call.1} parent=1 // loop_pre_header
      _
    $region3: #{tpu_custom_call.1} parent=1 // loop_header
      %s16 = sphi 0, %s20
      %p17 = scmp.ge.s32.totalorder %s16, 4
      %s26 = sphi 0, %s28
      %s29 = sphi 0, %s26
      %s30 = sphi 0, %s29
      %s46 = sphi 0, %s30
      %s50 = sphi 0, %s50
      %s52 = sphi 0, %s50
      %s53 = sphi 0, %s52
      %s67 = sphi 0, %s53
      %s71 = sphi 0, %s71
      %s73 = sphi 0, %s71
      %s74 = sphi 0, %s73
      %s88 = sphi 0, %s74
      %s94 = sphi 0, %s96
      %s97 = sphi 0, %s94
      %s98 = sphi 0, %s97
      %s114 = sphi 0, %s98
    $region4: #{tpu_custom_call.1} parent=1 // loop_header_branch
      %19 = sbr.rel (%p17) target = $region8
    $region5: #{tpu_custom_call.1} parent=1 // loop_body
      %s21 = ssub.s32 %s16, 1
      %s22 = ssub.s32 %s16, 2
      %s23 = sadd.s32 %s16, 1
      %s24 = ssub.s32 %s16, %s23
      %p25 = scmp.eq.s32.totalorder %s24, 0
      %s27 = sadd.s32 %s26, 1
      %s28 = scalar_select %p25, %s26, %s27
      %p31 = pneg %p25
      %p32 = scmp.eq.s32.totalorder %s16, 1
      %p33 = por %p31, %p32
      %p34 = scmp.ne.s32.totalorder %s26, %s29
      %p35 = scmp.eq.s32.totalorder %s16, 0
      %p36 = por %p34, %p35
      %p37 = scmp.ne.s32.totalorder %s26, %s29
      %p38 = scmp.eq.s32.totalorder %s21, 1
      %p39 = por %p37, %p38
      %p40 = scmp.ne.s32.totalorder %s29, %s30
      %p41 = scmp.eq.s32.totalorder %s21, 0
      %p42 = por %p40, %p41
      %p43 = scmp.ne.s32.totalorder %s29, %s30
      %p44 = scmp.eq.s32.totalorder %s22, 1
      %p45 = por %p43, %p44
      %p47 = scmp.ne.s32.totalorder %s30, %s46
      %p48 = scmp.eq.s32.totalorder %s22, 0
      %p49 = por %p47, %p48
      %s51 = sadd.s32 %s50, 1
      %p54 = scmp.eq.s32.totalorder %s16, 1
      %p55 = scmp.ne.s32.totalorder %s50, %s52
      %p56 = scmp.eq.s32.totalorder %s16, 0
      %p57 = por %p55, %p56
      %p58 = scmp.ne.s32.totalorder %s50, %s52
      %p59 = scmp.eq.s32.totalorder %s21, 1
      %p60 = por %p58, %p59
      %p61 = scmp.ne.s32.totalorder %s52, %s53
      %p62 = scmp.eq.s32.totalorder %s21, 0
      %p63 = por %p61, %p62
      %p64 = scmp.ne.s32.totalorder %s52, %s53
      %p65 = scmp.eq.s32.totalorder %s22, 1
      %p66 = por %p64, %p65
      %p68 = scmp.ne.s32.totalorder %s53, %s67
      %p69 = scmp.eq.s32.totalorder %s22, 0
      %p70 = por %p68, %p69
      %s72 = sadd.s32 %s71, 1
      %p75 = scmp.eq.s32.totalorder %s16, 1
      %p76 = scmp.ne.s32.totalorder %s71, %s73
      %p77 = scmp.eq.s32.totalorder %s16, 0
      %p78 = por %p76, %p77
      %p79 = scmp.ne.s32.totalorder %s71, %s73
      %p80 = scmp.eq.s32.totalorder %s21, 1
      %p81 = por %p79, %p80
      %p82 = scmp.ne.s32.totalorder %s73, %s74
      %p83 = scmp.eq.s32.totalorder %s21, 0
      %p84 = por %p82, %p83
      %p85 = scmp.ne.s32.totalorder %s73, %s74
      %p86 = scmp.eq.s32.totalorder %s22, 1
      %p87 = por %p85, %p86
      %p89 = scmp.ne.s32.totalorder %s74, %s88
      %p90 = scmp.eq.s32.totalorder %s22, 0
      %p91 = por %p89, %p90
      %s92 = ssub.s32 %s16, %s23
      %p93 = scmp.eq.s32.totalorder %s92, 0
      %s95 = sadd.s32 %s94, 1
      %s96 = scalar_select %p93, %s94, %s95
      %p99 = pneg %p93
      %p100 = scmp.eq.s32.totalorder %s16, 1
      %p101 = por %p99, %p100
      %p102 = scmp.ne.s32.totalorder %s94, %s97
      %p103 = scmp.eq.s32.totalorder %s16, 0
      %p104 = por %p102, %p103
      %p105 = scmp.ne.s32.totalorder %s94, %s97
      %p106 = scmp.eq.s32.totalorder %s21, 1
      %p107 = por %p105, %p106
      %p108 = scmp.ne.s32.totalorder %s97, %s98
      %p109 = scmp.eq.s32.totalorder %s21, 0
      %p110 = por %p108, %p109
      %p111 = scmp.ne.s32.totalorder %s97, %s98
      %p112 = scmp.eq.s32.totalorder %s22, 1
      %p113 = por %p111, %p112
      %p115 = scmp.ne.s32.totalorder %s98, %s114
      %p116 = scmp.eq.s32.totalorder %s22, 0
      %p117 = por %p115, %p116
      %p118 = scmp.le.s32.totalorder 1, %s16
      %p119 = scmp.lt.s32.totalorder %s16, 3
      %p120 = pnand %p118, %p119
      %p121 = pneg %p120
      // Predicated region
      $region9: #{tpu_custom_call.1} parent=5 // pred_check
        _
      $region10: #{tpu_custom_call.1} parent=5 // pred_check_branch
        %123 = sbr.rel (%p120) target = $region12
      $region11: #{tpu_custom_call.1} parent=5 // pred_region
        %s124 = ssub.s32 %s16, 1
        // Predicated region
        $region13: #{tpu_custom_call.1} parent=11 // pred_check
          %p125 = pneg %p63
        $region14: #{tpu_custom_call.1} parent=11 // pred_check_branch
          %127 = sbr.rel (%p125) target = $region16
        $region15: #{tpu_custom_call.1} parent=11 // pred_region
          %129 = vsyncadd [#allocation6], 0
          %s130 = sshll.u32 %s1, 4
          %s131 = int_to_ptr.hbm [resolvable:$true] %s130
          %s132 = sshll.u32 [#allocation5], 4
          %s133 = int_to_ptr.vmem [resolvable:$true] %s132
          %138 = dma.hbm_to_vmem [thread:$0]  %s131, 3072, %s133, [#allocation6], 64, 64, 4
        $region16: #{tpu_custom_call.1} parent=11 // pred_fallthru
          _
        // Predicated region
        $region17: #{tpu_custom_call.1} parent=11 // pred_check
          %p139 = pneg %p84
        $region18: #{tpu_custom_call.1} parent=11 // pred_check_branch
          %141 = sbr.rel (%p139) target = $region20
        $region19: #{tpu_custom_call.1} parent=11 // pred_region
          %143 = vsyncadd [#allocation6], 0
          %s144 = sshll.u32 %s2, 4
          %s145 = int_to_ptr.hbm [resolvable:$true] %s144
          %s146 = sshll.u32 [#allocation7], 4
          %s147 = int_to_ptr.vmem [resolvable:$true] %s146
          %152 = dma.hbm_to_vmem [thread:$0]  %s145, 48, %s147, [#allocation6], 16, 16, 1
        $region20: #{tpu_custom_call.1} parent=11 // pred_fallthru
          _
      $region12: #{tpu_custom_call.1} parent=5 // pred_fallthru
        _
      %p153 = scmp.lt.s32.totalorder %s16, 2
      // Predicated region
      $region21: #{tpu_custom_call.1} parent=5 // pred_check
        %p154 = pneg %p153
      $region22: #{tpu_custom_call.1} parent=5 // pred_check_branch
        %156 = sbr.rel (%p154) target = $region24
      $region23: #{tpu_custom_call.1} parent=5 // pred_region
        // Predicated region
        $region25: #{tpu_custom_call.1} parent=23 // pred_check
          %p157 = pneg %p36
        $region26: #{tpu_custom_call.1} parent=23 // pred_check_branch
          %159 = sbr.rel (%p157) target = $region28
        $region27: #{tpu_custom_call.1} parent=23 // pred_region
          %s160 = sand.u32 %s26, 1
          %s161 = scalar_lea.sflag [#allocation3], %s160
          %s162 = sand.u32 %s26, 1
          %s163 = smul.addr %s162, 8
          %s164 = scalar_lea.vmem [#allocation2], %s163
          %166 = vsyncadd %s161, 0
          %s167 = smul.addr %s16, 8
          %s168 = scalar_lea.hbm %s0, %s167
          %s170 = sshll.u32 %s168, 4
          %s171 = int_to_ptr.hbm [resolvable:$true] %s170
          %s172 = sshll.u32 %s164, 4
          %s173 = int_to_ptr.vmem [resolvable:$true] %s172
          %175 = dma.hbm_to_vmem [thread:$0]  %s171, 128, %s173, %s161
        $region28: #{tpu_custom_call.1} parent=23 // pred_fallthru
          _
      $region24: #{tpu_custom_call.1} parent=5 // pred_fallthru
        _
      %p176 = scmp.le.s32.totalorder 1, %s16
      %p177 = scmp.lt.s32.totalorder %s16, 3
      %p178 = pnand %p176, %p177
      %p179 = pneg %p178
      // Predicated region
      $region29: #{tpu_custom_call.1} parent=5 // pred_check
        _
      $region30: #{tpu_custom_call.1} parent=5 // pred_check_branch
        %181 = sbr.rel (%p178) target = $region32
      $region31: #{tpu_custom_call.1} parent=5 // pred_region
        %s182 = ssub.s32 %s16, 1
        %s183 = sand.u32 %s29, 1
        %s184 = scalar_lea.sflag [#allocation3], %s183
        %s185 = sand.u32 %s29, 1
        %s186 = smul.addr %s185, 8
        %s187 = scalar_lea.vmem [#allocation2], %s186
        // Predicated region
        $region33: #{tpu_custom_call.1} parent=31 // pred_check
          %p188 = pneg %p42
        $region34: #{tpu_custom_call.1} parent=31 // pred_check_branch
          %190 = sbr.rel (%p188) target = $region36
        $region35: #{tpu_custom_call.1} parent=31 // pred_region
          %192 = dma.done %s184, 128
        $region36: #{tpu_custom_call.1} parent=31 // pred_fallthru
          _
        // Predicated region
        $region37: #{tpu_custom_call.1} parent=31 // pred_check
          %p193 = pneg %p63
        $region38: #{tpu_custom_call.1} parent=31 // pred_check_branch
          %195 = sbr.rel (%p193) target = $region40
        $region39: #{tpu_custom_call.1} parent=31 // pred_region
          %197 = dma.done [#allocation6], 3072
        $region40: #{tpu_custom_call.1} parent=31 // pred_fallthru
          _
        // Predicated region
        $region41: #{tpu_custom_call.1} parent=31 // pred_check
          %p198 = pneg %p84
        $region42: #{tpu_custom_call.1} parent=31 // pred_check_branch
          %200 = sbr.rel (%p198) target = $region44
        $region43: #{tpu_custom_call.1} parent=31 // pred_region
          %202 = dma.done [#allocation6], 48
        $region44: #{tpu_custom_call.1} parent=31 // pred_fallthru
          _
        %s203 = sand.u32 %s29, 1
        %s204 = scalar_lea.sflag [#allocation3], %s203
        %s205 = sand.u32 %s29, 1
        %s206 = smul.addr %s205, 8
        %s207 = scalar_lea.vmem [#allocation2], %s206
        %p208 = pneg %p42
        %p209 = pneg %p39
        %p210 = pneg %p63
        %p211 = pneg %p60
        %p212 = pneg %p84
        %p213 = pneg %p81
        %p214 = pneg %p110
        %p215 = pneg %p107
        %s216 = sand.u32 %s97, 1
        %s217 = scalar_lea.sflag [#allocation4], %s216
        %s218 = sand.u32 %s97, 1
        %s219 = smul.addr %s218, 8
        %s220 = scalar_lea.vmem [#allocation8], %s219
        %v221 = vld [vmem:[%s187] sm:$0xff]
        %v222 = vld [vmem:[#allocation5] sm:$0xf]
        %v223 = vld [vmem:[#allocation5 + $0x4] sm:$0xf]
        %v224 = vld [vmem:[#allocation5 + $0x8] sm:$0xf]
        %v225 = vld [vmem:[#allocation5 + $0xc] sm:$0xf]
        %v226 = vld [vmem:[#allocation5 + $0x10] sm:$0xf]
        %v227 = vld [vmem:[#allocation5 + $0x14] sm:$0xf]
        %v228 = vld [vmem:[#allocation5 + $0x18] sm:$0xf]
        %v229 = vld [vmem:[#allocation5 + $0x1c] sm:$0xf]
        %v230 = vld [vmem:[#allocation5 + $0x20] sm:$0xf]
        %v231 = vld [vmem:[#allocation5 + $0x24] sm:$0xf]
        %v232 = vld [vmem:[#allocation5 + $0x28] sm:$0xf]
        %v233 = vld [vmem:[#allocation5 + $0x2c] sm:$0xf]
        %v234 = vld [vmem:[#allocation5 + $0x30] sm:$0xf]
        %v235 = vld [vmem:[#allocation5 + $0x34] sm:$0xf]
        %v236 = vld [vmem:[#allocation5 + $0x38] sm:$0xf]
        %v237 = vld [vmem:[#allocation5 + $0x3c] sm:$0xf]
        %v238 = vld [vmem:[#allocation7] sm:$0x1]
        %v239 = vpack.c.bf16 %v221, %v221
        %v241 = vperm.slane %v238, 0
        %v259 = vunpack.c.l.b16 %v222
        %v260 = vunpack.c.l.b16 %v223
        %v261 = vunpack.c.l.b16 %v224
        %v262 = vunpack.c.l.b16 %v225
        %v263 = vunpack.c.l.b16 %v226
        %v264 = vunpack.c.l.b16 %v227
        %v265 = vunpack.c.l.b16 %v228
        %v266 = vunpack.c.l.b16 %v229
        %v267 = vunpack.c.l.b16 %v230
        %v268 = vunpack.c.l.b16 %v231
        %v269 = vunpack.c.l.b16 %v232
        %v270 = vunpack.c.l.b16 %v233
        %v271 = vunpack.c.l.b16 %v234
        %v272 = vunpack.c.l.b16 %v235
        %v273 = vunpack.c.l.b16 %v236
        %v274 = vunpack.c.l.b16 %v237
        %v275 = vpack.c.b16 %v260, %v259
        %v276 = vpack.c.b16 %v262, %v261
        %v277 = vpack.c.b16 %v264, %v263
        %v278 = vpack.c.b16 %v266, %v265
        %v279 = vpack.c.b16 %v268, %v267
        %v280 = vpack.c.b16 %v270, %v269
        %v281 = vpack.c.b16 %v272, %v271
        %v282 = vpack.c.b16 %v274, %v273
        %291 = vmatpush.bf16.msra.mxu0 %v282
        %292 = vmatpush.bf16.msra.mxu0 %v281
        %293 = vmatpush.bf16.msra.mxu0 %v280
        %294 = vmatpush.bf16.msra.mxu0 %v279
        %295 = vmatpush.bf16.msra.mxu0 %v278
        %296 = vmatpush.bf16.msra.mxu0 %v277
        %297 = vmatpush.bf16.msra.mxu0 %v276
        %298 = vmatpush.bf16.msra.mxu0 %v275
        %299 = vmatmul.bf16.gmra.mxu0 %v239
        %v300 = vpop.f32.mrf.mxu0
        %v301 = vadd.f32 %v241, %v300
        %v302 = vpop.f32.mrf.mxu0
        %303 = vdwg.mxu0
        %v304 = vadd.f32 %v221, %v301
        %v305 = vmax.f32 %v304, 0.0
        %s306 = scalar_lea.vmem [#allocation5], 64
        %v307 = vld [vmem:[%s306] sm:$0xf]
        %v308 = vld [vmem:[%s306 + $0x4] sm:$0xf]
        %v309 = vld [vmem:[%s306 + $0x8] sm:$0xf]
        %v310 = vld [vmem:[%s306 + $0xc] sm:$0xf]
        %v311 = vld [vmem:[%s306 + $0x10] sm:$0xf]
        %v312 = vld [vmem:[%s306 + $0x14] sm:$0xf]
        %v313 = vld [vmem:[%s306 + $0x18] sm:$0xf]
        %v314 = vld [vmem:[%s306 + $0x1c] sm:$0xf]
        %v315 = vld [vmem:[%s306 + $0x20] sm:$0xf]
        %v316 = vld [vmem:[%s306 + $0x24] sm:$0xf]
        %v317 = vld [vmem:[%s306 + $0x28] sm:$0xf]
        %v318 = vld [vmem:[%s306 + $0x2c] sm:$0xf]
        %v319 = vld [vmem:[%s306 + $0x30] sm:$0xf]
        %v320 = vld [vmem:[%s306 + $0x34] sm:$0xf]
        %v321 = vld [vmem:[%s306 + $0x38] sm:$0xf]
        %v322 = vld [vmem:[%s306 + $0x3c] sm:$0xf]
        %s323 = scalar_lea.vmem [#allocation7], 1
        %v324 = vld [vmem:[%s323] sm:$0x1]
        %v325 = vpack.c.bf16 %v305, %v305
        %v327 = vperm.slane %v324, 0
        %v345 = vunpack.c.l.b16 %v307
        %v346 = vunpack.c.l.b16 %v308
        %v347 = vunpack.c.l.b16 %v309
        %v348 = vunpack.c.l.b16 %v310
        %v349 = vunpack.c.l.b16 %v311
        %v350 = vunpack.c.l.b16 %v312
        %v351 = vunpack.c.l.b16 %v313
        %v352 = vunpack.c.l.b16 %v314
        %v353 = vunpack.c.l.b16 %v315
        %v354 = vunpack.c.l.b16 %v316
        %v355 = vunpack.c.l.b16 %v317
        %v356 = vunpack.c.l.b16 %v318
        %v357 = vunpack.c.l.b16 %v319
        %v358 = vunpack.c.l.b16 %v320
        %v359 = vunpack.c.l.b16 %v321
        %v360 = vunpack.c.l.b16 %v322
        %v361 = vpack.c.b16 %v346, %v345
        %v362 = vpack.c.b16 %v348, %v347
        %v363 = vpack.c.b16 %v350, %v349
        %v364 = vpack.c.b16 %v352, %v351
        %v365 = vpack.c.b16 %v354, %v353
        %v366 = vpack.c.b16 %v356, %v355
        %v367 = vpack.c.b16 %v358, %v357
        %v368 = vpack.c.b16 %v360, %v359
        %377 = vmatpush.bf16.msra.mxu0 %v368
        %378 = vmatpush.bf16.msra.mxu0 %v367
        %379 = vmatpush.bf16.msra.mxu0 %v366
        %380 = vmatpush.bf16.msra.mxu0 %v365
        %381 = vmatpush.bf16.msra.mxu0 %v364
        %382 = vmatpush.bf16.msra.mxu0 %v363
        %383 = vmatpush.bf16.msra.mxu0 %v362
        %384 = vmatpush.bf16.msra.mxu0 %v361
        %385 = vmatmul.bf16.gmra.mxu0 %v325
        %v386 = vpop.f32.mrf.mxu0
        %v387 = vadd.f32 %v327, %v386
        %v388 = vpop.f32.mrf.mxu0
        %389 = vdwg.mxu0
        %v390 = vadd.f32 %v305, %v387
        %v391 = vmax.f32 %v390, 0.0
        %s392 = scalar_lea.vmem [#allocation5], 128
        %v393 = vld [vmem:[%s392] sm:$0xf]
        %v394 = vld [vmem:[%s392 + $0x4] sm:$0xf]
        %v395 = vld [vmem:[%s392 + $0x8] sm:$0xf]
        %v396 = vld [vmem:[%s392 + $0xc] sm:$0xf]
        %v397 = vld [vmem:[%s392 + $0x10] sm:$0xf]
        %v398 = vld [vmem:[%s392 + $0x14] sm:$0xf]
        %v399 = vld [vmem:[%s392 + $0x18] sm:$0xf]
        %v400 = vld [vmem:[%s392 + $0x1c] sm:$0xf]
        %v401 = vld [vmem:[%s392 + $0x20] sm:$0xf]
        %v402 = vld [vmem:[%s392 + $0x24] sm:$0xf]
        %v403 = vld [vmem:[%s392 + $0x28] sm:$0xf]
        %v404 = vld [vmem:[%s392 + $0x2c] sm:$0xf]
        %v405 = vld [vmem:[%s392 + $0x30] sm:$0xf]
        %v406 = vld [vmem:[%s392 + $0x34] sm:$0xf]
        %v407 = vld [vmem:[%s392 + $0x38] sm:$0xf]
        %v408 = vld [vmem:[%s392 + $0x3c] sm:$0xf]
        %s409 = scalar_lea.vmem [#allocation7], 2
        %v410 = vld [vmem:[%s409] sm:$0x1]
        %v411 = vpack.c.bf16 %v391, %v391
        %v413 = vperm.slane %v410, 0
        %v431 = vunpack.c.l.b16 %v393
        %v432 = vunpack.c.l.b16 %v394
        %v433 = vunpack.c.l.b16 %v395
        %v434 = vunpack.c.l.b16 %v396
        %v435 = vunpack.c.l.b16 %v397
        %v436 = vunpack.c.l.b16 %v398
        %v437 = vunpack.c.l.b16 %v399
        %v438 = vunpack.c.l.b16 %v400
        %v439 = vunpack.c.l.b16 %v401
        %v440 = vunpack.c.l.b16 %v402
        %v441 = vunpack.c.l.b16 %v403
        %v442 = vunpack.c.l.b16 %v404
        %v443 = vunpack.c.l.b16 %v405
        %v444 = vunpack.c.l.b16 %v406
        %v445 = vunpack.c.l.b16 %v407
        %v446 = vunpack.c.l.b16 %v408
        %v447 = vpack.c.b16 %v432, %v431
        %v448 = vpack.c.b16 %v434, %v433
        %v449 = vpack.c.b16 %v436, %v435
        %v450 = vpack.c.b16 %v438, %v437
        %v451 = vpack.c.b16 %v440, %v439
        %v452 = vpack.c.b16 %v442, %v441
        %v453 = vpack.c.b16 %v444, %v443
        %v454 = vpack.c.b16 %v446, %v445
        %463 = vmatpush.bf16.msra.mxu0 %v454
        %464 = vmatpush.bf16.msra.mxu0 %v453
        %465 = vmatpush.bf16.msra.mxu0 %v452
        %466 = vmatpush.bf16.msra.mxu0 %v451
        %467 = vmatpush.bf16.msra.mxu0 %v450
        %468 = vmatpush.bf16.msra.mxu0 %v449
        %469 = vmatpush.bf16.msra.mxu0 %v448
        %470 = vmatpush.bf16.msra.mxu0 %v447
        %471 = vmatmul.bf16.gmra.mxu0 %v411
        %v472 = vpop.f32.mrf.mxu0
        %v473 = vadd.f32 %v413, %v472
        %v474 = vpop.f32.mrf.mxu0
        %475 = vdwg.mxu0
        %v476 = vadd.f32 %v391, %v473
        %v477 = vmax.f32 %v476, 0.0
        %478 = vst [vmem:[%s220] sm:$0xff] %v477
        %s479 = sand.u32 %s97, 1
        %s480 = scalar_lea.sflag [#allocation4], %s479
        %s481 = sand.u32 %s97, 1
        %s482 = smul.addr %s481, 8
        %s483 = scalar_lea.vmem [#allocation8], %s482
        // Predicated region
        $region45: #{tpu_custom_call.1} parent=31 // pred_check
          %p484 = pneg %p107
        $region46: #{tpu_custom_call.1} parent=31 // pred_check_branch
          %486 = sbr.rel (%p484) target = $region48
        $region47: #{tpu_custom_call.1} parent=31 // pred_region
          %488 = vsyncadd %s480, 0
          %s489 = smul.addr %s21, 8
          %s490 = scalar_lea.hbm %s3, %s489
          %s492 = sshll.u32 %s483, 4
          %s493 = int_to_ptr.vmem [resolvable:$true] %s492
          %s494 = sshll.u32 %s490, 4
          %s495 = int_to_ptr.hbm [resolvable:$true] %s494
          %497 = dma.vmem_to_hbm [thread:$0]  %s493, 128, %s495, %s480
        $region48: #{tpu_custom_call.1} parent=31 // pred_fallthru
          _
      $region32: #{tpu_custom_call.1} parent=5 // pred_fallthru
        _
      %p498 = scmp.le.s32.totalorder 2, %s16
      // Predicated region
      $region49: #{tpu_custom_call.1} parent=5 // pred_check
        %p499 = pneg %p498
      $region50: #{tpu_custom_call.1} parent=5 // pred_check_branch
        %501 = sbr.rel (%p499) target = $region52
      $region51: #{tpu_custom_call.1} parent=5 // pred_region
        %s502 = ssub.s32 %s16, 2
        // Predicated region
        $region53: #{tpu_custom_call.1} parent=51 // pred_check
          %p503 = pneg %p113
        $region54: #{tpu_custom_call.1} parent=51 // pred_check_branch
          %505 = sbr.rel (%p503) target = $region56
        $region55: #{tpu_custom_call.1} parent=51 // pred_region
          %s506 = sand.u32 %s98, 1
          %s507 = scalar_lea.sflag [#allocation4], %s506
          %s508 = sand.u32 %s98, 1
          %s509 = smul.addr %s508, 8
          %s510 = scalar_lea.vmem [#allocation8], %s509
          %512 = dma.done %s507, 128
        $region56: #{tpu_custom_call.1} parent=51 // pred_fallthru
          _
      $region52: #{tpu_custom_call.1} parent=5 // pred_fallthru
        _
    $region6: #{tpu_custom_call.1} parent=1 // loop_footer
      %s20 = sadd.s32 1, %s16
    $region7: #{tpu_custom_call.1} parent=1 // loop_footer_branch
      %15 = sbr.rel target = $region3
    $region8: #{tpu_custom_call.1} parent=1 // loop_exit
      _
    %513 = vsyncpa [#allocation3], 1
    %s514 = scalar_lea.sflag [#allocation3], 1
    %515 = vsyncpa %s514, 1
    %516 = vsyncpa [#allocation6], 1
    %517 = vsyncpa [#allocation4], 1
    %s518 = scalar_lea.sflag [#allocation4], 1
    %519 = vsyncpa %s518, 1

</llo_original>
